<compile_context>
chip_gen: v5e
topology: v5e:2x2
jax: 0.10.0
libtpu: 0.0.40
codegen_flags: <defaults>
</compile_context>

<pallas_src>
import jax
import jax.numpy as jnp
from jax import lax
from jax.experimental import pallas as pl
from jax.experimental.pallas import tpu as pltpu

_LANE = 128

# Contract lhs dim 1 with rhs dim 1 (i.e. W @ X^T) -- lets Mosaic do the
# relayout of the natural-layout x tile itself (XLU transpose / transposed
# matmul), instead of materializing x.T in HBM.
_TRANS_B_DIMS = (((1,), (1,)), ((), ()))


def _round_up(n, m):
    return ((n + m - 1) // m) * m


def diabednet_kernel(x_ref, w1_ref, b1_ref, w2_ref, b2_ref,
                     w3_ref, b3_ref, w4_ref, b4_ref, o_ref):
    # x_ref : [tb, input_size]   natural (batch-major) layout
    # wN_ref: [out, in]          (w4_ref is [classes, n3, 1])
    # bN_ref: [out, 1]
    # o_ref : [classes, tb]      lane-dense store (batch on lanes)
    x = x_ref[...]

    # fc1: [n1, in] @ [tb, in]^T -> [n1, tb]  (in-kernel relayout of x)
    h = lax.dot_general(w1_ref[...], x, _TRANS_B_DIMS,
                        preferred_element_type=jnp.float32) + b1_ref[...]
    h = jnp.maximum(h, 0.0)

    # fc2, fc3 on the MXU, batch on lanes.
    h = jnp.dot(w2_ref[...], h, preferred_element_type=jnp.float32) + b2_ref[...]
    h = jnp.maximum(h, 0.0)

    h = jnp.dot(w3_ref[...], h, preferred_element_type=jnp.float32) + b3_ref[...]
    h = jnp.maximum(h, 0.0)

    # fc4 on the VPU/XLU: classes (2) rows of broadcast-multiply + sublane sum
    # over n3 (8).  Avoids one MXU push/pop (and MRF drain) per lane strip.
    classes = o_ref.shape[0]
    rows = [jnp.sum(w4_ref[c] * h, axis=0, keepdims=True)   # [1, tb]
            for c in range(classes)]
    out = jnp.concatenate(rows, axis=0) + b4_ref[...]        # [classes, tb]
    o_ref[...] = out.astype(o_ref.dtype)


def diabednet_forward(x, params, *, batch_tile=4096):
    """x: [B, input_size] float32 (PyTorch convention). Returns [B, classes]."""
    w1, b1 = params["fc1"]
    w2, b2 = params["fc2"]
    w3, b3 = params["fc3"]
    w4, b4 = params["fc4"]

    B, input_size = x.shape
    classes, n3 = w4.shape
    assert batch_tile % _LANE == 0, "batch tile must be a multiple of 128 lanes"

    # Tile selection:
    #  * small B -> one tile (no grid overhead), only sublane-align it;
    #  * large B -> lane-aligned tiles, capped at ceil(B/2) so there are at
    #    least 2 grid steps for v7x dual-TC sharding of the "parallel" axis.
    if B <= 2 * _LANE:
        bp = _round_up(B, 8)
        tb = bp
    else:
        tb = max(_LANE, min(batch_tile, _round_up(pl.cdiv(B, 2), _LANE)))
        bp = B                      # partial last tile handled by Pallas OOB masking
    if bp != B:
        x = jnp.pad(x, ((0, bp - B), (0, 0)))   # <= 7 rows, small-B path only

    grid = (pl.cdiv(bp, tb),)

    # fc4 weights reshaped [classes, n3, 1] so the kernel's per-class rows
    # broadcast along lanes like a bias (no in-kernel relayout needed).
    w4_3d = w4.reshape(classes, n3, 1)

    def const_spec(a):
        # Full-array block, constant block index -> stays VMEM-resident.
        return pl.BlockSpec(a.shape, lambda i: (0,) * a.ndim)

    flops = 2 * bp * sum(int(w.shape[0]) * int(w.shape[1]) for w in (w1, w2, w3, w4))
    bytes_accessed = 4 * (bp * (input_size + classes)
                          + sum(int(w.size) + int(b.size)
                                for w, b in ((w1, b1), (w2, b2), (w3, b3), (w4, b4))))

    out_t = pl.pallas_call(
        diabednet_kernel,
        out_shape=jax.ShapeDtypeStruct((classes, bp), jnp.float32),
        grid=grid,
        in_specs=[
            pl.BlockSpec((tb, input_size), lambda i: (i, 0)),   # x tile, natural layout
            const_spec(w1), const_spec(b1),
            const_spec(w2), const_spec(b2),
            const_spec(w3), const_spec(b3),
            const_spec(w4_3d), const_spec(b4),
        ],
        out_specs=pl.BlockSpec((classes, tb), lambda i: (0, i)),
        compiler_params=pltpu.CompilerParams(
            dimension_semantics=("parallel",)),
        cost_estimate=pl.CostEstimate(
            flops=flops, transcendentals=0, bytes_accessed=bytes_accessed),
    )(x, w1, b1, w2, b2, w3, b3, w4_3d, b4)

    return out_t[:, :B].T


def init_params(key, input_size, n_hidden_1, n_hidden_2, n_hidden_3, classes):
    """Mimics torch.nn.Linear init: U(-1/sqrt(fan_in), 1/sqrt(fan_in)).
    Weights PyTorch-style [out, in]; biases [out, 1]."""
    sizes = [(input_size, n_hidden_1),
             (n_hidden_1, n_hidden_2),
             (n_hidden_2, n_hidden_3),
             (n_hidden_3, classes)]
    names = ["fc1", "fc2", "fc3", "fc4"]
    params = {}
    for name, (fan_in, fan_out) in zip(names, sizes):
        key, kw, kb = jax.random.split(key, 3)
        bound = 1.0 / jnp.sqrt(jnp.float32(fan_in))
        w = jax.random.uniform(kw, (fan_out, fan_in), jnp.float32, -bound, bound)
        b = jax.random.uniform(kb, (fan_out, 1), jnp.float32, -bound, bound)
        params[name] = (w, b)
    return params


def reference_forward(x, params):
    h = x
    for name in ["fc1", "fc2", "fc3"]:
        w, b = params[name]
        h = jnp.maximum(h @ w.T + b.T, 0.0)
    w, b = params["fc4"]
    return h @ w.T + b.T


if __name__ == "__main__":
    # Pima-diabetes style MLP config.
    config = {
        "model": {
            "input_size": 8,
            "n_hidden_1": 32,
            "n_hidden_2": 16,
            "n_hidden_3": 8,
            "classes": 2,
        }
    }

    key = jax.random.PRNGKey(0)
    params = init_params(
        key,
        config["model"]["input_size"],
        config["model"]["n_hidden_1"],
        config["model"]["n_hidden_2"],
        config["model"]["n_hidden_3"],
        config["model"]["classes"],
    )

    # Case 1: small batch -> single-tile path (grid=(1,)).
    B1 = 200
    key, kx1 = jax.random.split(key)
    x1 = jax.random.normal(kx1, (B1, config["model"]["input_size"]), jnp.float32)
    out1 = jax.block_until_ready(diabednet_forward(x1, params))
    ref1 = reference_forward(x1, params)
    assert out1.shape == (B1, config["model"]["classes"])
    assert jnp.allclose(out1, ref1, atol=1e-5, rtol=1e-5), "mismatch (single tile)"

    # Case 2: multi-step "parallel" grid with a partial last tile
    # (300 = 128 + 128 + 44) -> exercises pipelining + OOB masking.
    B2 = 300
    key, kx2 = jax.random.split(key)
    x2 = jax.random.normal(kx2, (B2, config["model"]["input_size"]), jnp.float32)
    out2 = jax.block_until_ready(diabednet_forward(x2, params, batch_tile=128))
    ref2 = reference_forward(x2, params)
    assert out2.shape == (B2, config["model"]["classes"])
    assert jnp.allclose(out2, ref2, atol=1e-5, rtol=1e-5), "mismatch (tiled grid)"

    print("KERNEL_OK")
</pallas_src>

<mosaic_0001>
module attributes {stable_mosaic.version = 11 : i64} {
  func.func @diabednet_kernel(%arg0: i32, %arg1: memref<200x8xf32, #tpu.memory_space<vmem>>, %arg2: memref<32x8xf32, #tpu.memory_space<vmem>>, %arg3: memref<32x1xf32, #tpu.memory_space<vmem>>, %arg4: memref<16x32xf32, #tpu.memory_space<vmem>>, %arg5: memref<16x1xf32, #tpu.memory_space<vmem>>, %arg6: memref<8x16xf32, #tpu.memory_space<vmem>>, %arg7: memref<8x1xf32, #tpu.memory_space<vmem>>, %arg8: memref<2x8x1xf32, #tpu.memory_space<vmem>>, %arg9: memref<2x1xf32, #tpu.memory_space<vmem>>, %arg10: memref<2x200xf32, #tpu.memory_space<vmem>>) attributes {dimension_semantics = [#tpu.dimension_semantics<parallel>], iteration_bounds = array<i64: 1>, scalar_prefetch = 0 : i64, scratch_operands = 0 : i64, tpu.core_type = #tpu.core_type<tc>, window_params = [{transform_indices = @transform_0, window_bounds = array<i64: 200, 8>}, {pipeline_mode = #tpu.pipeline_mode<synchronous>, transform_indices = @transform_1, window_bounds = array<i64: 32, 8>}, {pipeline_mode = #tpu.pipeline_mode<synchronous>, transform_indices = @transform_2, window_bounds = array<i64: 32, 1>}, {pipeline_mode = #tpu.pipeline_mode<synchronous>, transform_indices = @transform_3, window_bounds = array<i64: 16, 32>}, {pipeline_mode = #tpu.pipeline_mode<synchronous>, transform_indices = @transform_4, window_bounds = array<i64: 16, 1>}, {pipeline_mode = #tpu.pipeline_mode<synchronous>, transform_indices = @transform_5, window_bounds = array<i64: 8, 16>}, {pipeline_mode = #tpu.pipeline_mode<synchronous>, transform_indices = @transform_6, window_bounds = array<i64: 8, 1>}, {pipeline_mode = #tpu.pipeline_mode<synchronous>, transform_indices = @transform_7, window_bounds = array<i64: 2, 8, 1>}, {pipeline_mode = #tpu.pipeline_mode<synchronous>, transform_indices = @transform_8, window_bounds = array<i64: 2, 1>}, {transform_indices = @transform_9, window_bounds = array<i64: 2, 200>}]} {
    %c0 = arith.constant 0 : index
    %c0_0 = arith.constant 0 : index
    %0 = vector.load %arg1[%c0, %c0_0] : memref<200x8xf32, #tpu.memory_space<vmem>>, vector<200x8xf32>
    %c0_1 = arith.constant 0 : index
    %c0_2 = arith.constant 0 : index
    %1 = vector.load %arg2[%c0_1, %c0_2] : memref<32x8xf32, #tpu.memory_space<vmem>>, vector<32x8xf32>
    %cst = arith.constant dense<0.000000e+00> : vector<32x200xf32>
    %2 = tpu.matmul %1, %0, %cst {dimension_numbers = #tpu.dot_dimension_numbers<[1], [1], [0], [0], [0, 0, 1, 0], [], []>} : vector<32x8xf32>, vector<200x8xf32>, vector<32x200xf32> -> vector<32x200xf32>
    %c0_3 = arith.constant 0 : index
    %c0_4 = arith.constant 0 : index
    %3 = vector.load %arg3[%c0_3, %c0_4] : memref<32x1xf32, #tpu.memory_space<vmem>>, vector<32x1xf32>
    %4 = vector.broadcast %3 : vector<32x1xf32> to vector<32x200xf32>
    %5 = arith.addf %2, %4 : vector<32x200xf32>
    %cst_5 = arith.constant 0.000000e+00 : f32
    %6 = vector.broadcast %cst_5 : f32 to vector<32x200xf32>
    %7 = arith.maximumf %5, %6 : vector<32x200xf32>
    %c0_6 = arith.constant 0 : index
    %c0_7 = arith.constant 0 : index
    %8 = vector.load %arg4[%c0_6, %c0_7] : memref<16x32xf32, #tpu.memory_space<vmem>>, vector<16x32xf32>
    %cst_8 = arith.constant dense<0.000000e+00> : vector<16x200xf32>
    %9 = tpu.matmul %8, %7, %cst_8 {dimension_numbers = #tpu.dot_dimension_numbers<[1], [0], [0], [1], [0, 0, 1, 1], [], []>} : vector<16x32xf32>, vector<32x200xf32>, vector<16x200xf32> -> vector<16x200xf32>
    %c0_9 = arith.constant 0 : index
    %c0_10 = arith.constant 0 : index
    %10 = vector.load %arg5[%c0_9, %c0_10] : memref<16x1xf32, #tpu.memory_space<vmem>>, vector<16x1xf32>
    %11 = vector.broadcast %10 : vector<16x1xf32> to vector<16x200xf32>
    %12 = arith.addf %9, %11 : vector<16x200xf32>
    %cst_11 = arith.constant 0.000000e+00 : f32
    %13 = vector.broadcast %cst_11 : f32 to vector<16x200xf32>
    %14 = arith.maximumf %12, %13 : vector<16x200xf32>
    %c0_12 = arith.constant 0 : index
    %c0_13 = arith.constant 0 : index
    %15 = vector.load %arg6[%c0_12, %c0_13] : memref<8x16xf32, #tpu.memory_space<vmem>>, vector<8x16xf32>
    %cst_14 = arith.constant dense<0.000000e+00> : vector<8x200xf32>
    %16 = tpu.matmul %15, %14, %cst_14 {dimension_numbers = #tpu.dot_dimension_numbers<[1], [0], [0], [1], [0, 0, 1, 1], [], []>} : vector<8x16xf32>, vector<16x200xf32>, vector<8x200xf32> -> vector<8x200xf32>
    %c0_15 = arith.constant 0 : index
    %c0_16 = arith.constant 0 : index
    %17 = vector.load %arg7[%c0_15, %c0_16] : memref<8x1xf32, #tpu.memory_space<vmem>>, vector<8x1xf32>
    %18 = vector.broadcast %17 : vector<8x1xf32> to vector<8x200xf32>
    %19 = arith.addf %16, %18 : vector<8x200xf32>
    %cst_17 = arith.constant 0.000000e+00 : f32
    %20 = vector.broadcast %cst_17 : f32 to vector<8x200xf32>
    %21 = arith.maximumf %19, %20 : vector<8x200xf32>
    %c0_18 = arith.constant 0 : index
    %c0_19 = arith.constant 0 : index
    %c0_20 = arith.constant 0 : index
    %22 = vector.load %arg8[%c0_18, %c0_19, %c0_20] : memref<2x8x1xf32, #tpu.memory_space<vmem>>, vector<1x8x1xf32>
    %23 = vector.shape_cast %22 : vector<1x8x1xf32> to vector<8x1xf32>
    %24 = vector.broadcast %23 : vector<8x1xf32> to vector<8x200xf32>
    %25 = arith.mulf %24, %21 : vector<8x200xf32>
    %cst_21 = arith.constant dense<0.000000e+00> : vector<200xf32>
    %26 = vector.multi_reduction <add>, %25, %cst_21 [0] : vector<8x200xf32> to vector<200xf32>
    %27 = vector.shape_cast %26 : vector<200xf32> to vector<1x200xf32>
    %c1 = arith.constant 1 : index
    %c0_22 = arith.constant 0 : index
    %c0_23 = arith.constant 0 : index
    %28 = vector.load %arg8[%c1, %c0_22, %c0_23] : memref<2x8x1xf32, #tpu.memory_space<vmem>>, vector<1x8x1xf32>
    %29 = vector.shape_cast %28 : vector<1x8x1xf32> to vector<8x1xf32>
    %30 = vector.broadcast %29 : vector<8x1xf32> to vector<8x200xf32>
    %31 = arith.mulf %30, %21 : vector<8x200xf32>
    %cst_24 = arith.constant dense<0.000000e+00> : vector<200xf32>
    %32 = vector.multi_reduction <add>, %31, %cst_24 [0] : vector<8x200xf32> to vector<200xf32>
    %33 = vector.shape_cast %32 : vector<200xf32> to vector<1x200xf32>
    %34 = tpu.concatenate %27, %33 in 0 : vector<1x200xf32>, vector<1x200xf32> -> vector<2x200xf32>
    %c0_25 = arith.constant 0 : index
    %c0_26 = arith.constant 0 : index
    %35 = vector.load %arg9[%c0_25, %c0_26] : memref<2x1xf32, #tpu.memory_space<vmem>>, vector<2x1xf32>
    %36 = vector.broadcast %35 : vector<2x1xf32> to vector<2x200xf32>
    %37 = arith.addf %34, %36 : vector<2x200xf32>
    %c0_27 = arith.constant 0 : index
    %c0_28 = arith.constant 0 : index
    %38 = vector.load %arg10[%c0_27, %c0_28] : memref<2x200xf32, #tpu.memory_space<vmem>>, vector<2x200xf32>
    tpu.vector_store %arg10[%c0_27, %c0_28], %37 {strides = array<i32>} : memref<2x200xf32, #tpu.memory_space<vmem>>, vector<2x200xf32>,
    return
  }
  func.func @transform_0(%arg0: i32) -> (i32, i32) {
    %c0_i32 = arith.constant 0 : i32
    %c0_i32_0 = arith.constant 0 : i32
    return %arg0, %c0_i32 : i32, i32
  }
  func.func @transform_1(%arg0: i32) -> (i32, i32) {
    %c0_i32 = arith.constant 0 : i32
    %c0_i32_0 = arith.constant 0 : i32
    %c0_i32_1 = arith.constant 0 : i32
    return %c0_i32, %c0_i32_0 : i32, i32
  }
  func.func @transform_2(%arg0: i32) -> (i32, i32) {
    %c0_i32 = arith.constant 0 : i32
    %c0_i32_0 = arith.constant 0 : i32
    %c0_i32_1 = arith.constant 0 : i32
    return %c0_i32, %c0_i32_0 : i32, i32
  }
  func.func @transform_3(%arg0: i32) -> (i32, i32) {
    %c0_i32 = arith.constant 0 : i32
    %c0_i32_0 = arith.constant 0 : i32
    %c0_i32_1 = arith.constant 0 : i32
    return %c0_i32, %c0_i32_0 : i32, i32
  }
  func.func @transform_4(%arg0: i32) -> (i32, i32) {
    %c0_i32 = arith.constant 0 : i32
    %c0_i32_0 = arith.constant 0 : i32
    %c0_i32_1 = arith.constant 0 : i32
    return %c0_i32, %c0_i32_0 : i32, i32
  }
  func.func @transform_5(%arg0: i32) -> (i32, i32) {
    %c0_i32 = arith.constant 0 : i32
    %c0_i32_0 = arith.constant 0 : i32
    %c0_i32_1 = arith.constant 0 : i32
    return %c0_i32, %c0_i32_0 : i32, i32
  }
  func.func @transform_6(%arg0: i32) -> (i32, i32) {
    %c0_i32 = arith.constant 0 : i32
    %c0_i32_0 = arith.constant 0 : i32
    %c0_i32_1 = arith.constant 0 : i32
    return %c0_i32, %c0_i32_0 : i32, i32
  }
  func.func @transform_7(%arg0: i32) -> (i32, i32, i32) {
    %c0_i32 = arith.constant 0 : i32
    %c0_i32_0 = arith.constant 0 : i32
    %c0_i32_1 = arith.constant 0 : i32
    %c0_i32_2 = arith.constant 0 : i32
    return %c0_i32, %c0_i32_0, %c0_i32_1 : i32, i32, i32
  }
  func.func @transform_8(%arg0: i32) -> (i32, i32) {
    %c0_i32 = arith.constant 0 : i32
    %c0_i32_0 = arith.constant 0 : i32
    %c0_i32_1 = arith.constant 0 : i32
    return %c0_i32, %c0_i32_0 : i32, i32
  }
  func.func @transform_9(%arg0: i32) -> (i32, i32) {
    %c0_i32 = arith.constant 0 : i32
    %c0_i32_0 = arith.constant 0 : i32
    return %c0_i32, %arg0 : i32, i32
  }
}

</mosaic_0001>

<llo_original>
// kernel: tpu_custom_call.1
$region0: #{tpu_custom_call.1}
  #allocation0 [shape = 'u32[]', space=smem, size = 0x4, offset = 0x4, fixed_abs, tag = 'smem constant byte address 0x4 - core index']
  #allocation1 [shape = 'u32[72,128]{1,0:T(1,128)}', space=vmem, size = 0x9000, scoped, tag = 'internal scratch']
  %s0 = inlined_call_operand.vmem [shape: f32[200,8], index: 0, kind: input, shape index: {}]
  %s1 = inlined_call_operand.vmem [shape: f32[32,8], index: 1, kind: input, shape index: {}]
  %s2 = inlined_call_operand.vmem [shape: f32[32,1], index: 2, kind: input, shape index: {}]
  %s3 = inlined_call_operand.vmem [shape: f32[16,32], index: 3, kind: input, shape index: {}]
  %s4 = inlined_call_operand.vmem [shape: f32[16,1], index: 4, kind: input, shape index: {}]
  %s5 = inlined_call_operand.vmem [shape: f32[8,16], index: 5, kind: input, shape index: {}]
  %s6 = inlined_call_operand.vmem [shape: f32[8,1], index: 6, kind: input, shape index: {}]
  %s7 = inlined_call_operand.vmem [shape: f32[2,8,1], index: 7, kind: input, shape index: {}]
  %s8 = inlined_call_operand.vmem [shape: f32[2,1], index: 8, kind: input, shape index: {}]
  %s9 = inlined_call_operand.hbm [shape: f32[2,200], index: 9, kind: output, shape index: {}]
  %s10 = sld [smem:[#allocation0]]
  $region46: #{tpu_custom_call.1} parent=0
    _
  %s12 = ssub.s32 1, %s10
  %s13 = scalar_select 0, %s12, %s10
  $region1: #{tpu_custom_call.1} parent=0
    #allocation2 [shape = 'u8[2048]{0}', space=vmem, size = 0x800, scoped, tag = 'output window, operand 0, single buffered']
    #allocation3 [shape = 's32[1]{0}', space=sflag, size = 0x4, scoped, tag = 'scoped memory for tpu_custom_call.1']
    %14 = vsyncpa [#allocation3], 0
    // Predicated region
    $region2: #{tpu_custom_call.1} parent=1 // pred_check
      _
    $region3: #{tpu_custom_call.1} parent=1 // pred_check_branch
      %16 = sbr.rel (0) target = $region5
    $region4: #{tpu_custom_call.1} parent=1 // pred_region
      _
    $region5: #{tpu_custom_call.1} parent=1 // pred_fallthru
      _
    // Predicated region
    $region6: #{tpu_custom_call.1} parent=1 // pred_check
      _
    $region7: #{tpu_custom_call.1} parent=1 // pred_check_branch
      %18 = sbr.rel (0) target = $region9
    $region8: #{tpu_custom_call.1} parent=1 // pred_region
      _
    $region9: #{tpu_custom_call.1} parent=1 // pred_fallthru
      _
    // Predicated region
    $region10: #{tpu_custom_call.1} parent=1 // pred_check
      _
    $region11: #{tpu_custom_call.1} parent=1 // pred_check_branch
      %20 = sbr.rel (0) target = $region13
    $region12: #{tpu_custom_call.1} parent=1 // pred_region
      _
    $region13: #{tpu_custom_call.1} parent=1 // pred_fallthru
      _
    // Predicated region
    $region14: #{tpu_custom_call.1} parent=1 // pred_check
      _
    $region15: #{tpu_custom_call.1} parent=1 // pred_check_branch
      %22 = sbr.rel (0) target = $region17
    $region16: #{tpu_custom_call.1} parent=1 // pred_region
      _
    $region17: #{tpu_custom_call.1} parent=1 // pred_fallthru
      _
    // Predicated region
    $region18: #{tpu_custom_call.1} parent=1 // pred_check
      _
    $region19: #{tpu_custom_call.1} parent=1 // pred_check_branch
      %24 = sbr.rel (0) target = $region21
    $region20: #{tpu_custom_call.1} parent=1 // pred_region
      _
    $region21: #{tpu_custom_call.1} parent=1 // pred_fallthru
      _
    // Predicated region
    $region22: #{tpu_custom_call.1} parent=1 // pred_check
      _
    $region23: #{tpu_custom_call.1} parent=1 // pred_check_branch
      %26 = sbr.rel (0) target = $region25
    $region24: #{tpu_custom_call.1} parent=1 // pred_region
      _
    $region25: #{tpu_custom_call.1} parent=1 // pred_fallthru
      _
    // Predicated region
    $region26: #{tpu_custom_call.1} parent=1 // pred_check
      _
    $region27: #{tpu_custom_call.1} parent=1 // pred_check_branch
      %28 = sbr.rel (0) target = $region29
    $region28: #{tpu_custom_call.1} parent=1 // pred_region
      _
    $region29: #{tpu_custom_call.1} parent=1 // pred_fallthru
      _
    // Predicated region
    $region30: #{tpu_custom_call.1} parent=1 // pred_check
      _
    $region31: #{tpu_custom_call.1} parent=1 // pred_check_branch
      %30 = sbr.rel (0) target = $region33
    $region32: #{tpu_custom_call.1} parent=1 // pred_region
      _
    $region33: #{tpu_custom_call.1} parent=1 // pred_fallthru
      _
    // Predicated region
    $region34: #{tpu_custom_call.1} parent=1 // pred_check
      _
    $region35: #{tpu_custom_call.1} parent=1 // pred_check_branch
      %32 = sbr.rel (0) target = $region37
    $region36: #{tpu_custom_call.1} parent=1 // pred_region
      _
    $region37: #{tpu_custom_call.1} parent=1 // pred_fallthru
      _
    %v33 = vld [vmem:[%s0] sm:$0xff]
    %v34 = vld [vmem:[%s0 + $0x8] sm:$0xff]
    %v35 = vld [vmem:[%s0 + $0x10] sm:$0xff]
    %v36 = vld [vmem:[%s0 + $0x18] sm:$0xff]
    %v37 = vld [vmem:[%s0 + $0x20] sm:$0xff]
    %v38 = vld [vmem:[%s0 + $0x28] sm:$0xff]
    %v39 = vld [vmem:[%s0 + $0x30] sm:$0xff]
    %v40 = vld [vmem:[%s0 + $0x38] sm:$0xff]
    %v41 = vld [vmem:[%s0 + $0x40] sm:$0xff]
    %v42 = vld [vmem:[%s0 + $0x48] sm:$0xff]
    %v43 = vld [vmem:[%s0 + $0x50] sm:$0xff]
    %v44 = vld [vmem:[%s0 + $0x58] sm:$0xff]
    %v45 = vld [vmem:[%s0 + $0x60] sm:$0xff]
    %v46 = vld [vmem:[%s0 + $0x68] sm:$0xff]
    %v47 = vld [vmem:[%s0 + $0x70] sm:$0xff]
    %v48 = vld [vmem:[%s0 + $0x78] sm:$0xff]
    %v49 = vld [vmem:[%s0 + $0x80] sm:$0xff]
    %v50 = vld [vmem:[%s0 + $0x88] sm:$0xff]
    %v51 = vld [vmem:[%s0 + $0x90] sm:$0xff]
    %v52 = vld [vmem:[%s0 + $0x98] sm:$0xff]
    %v53 = vld [vmem:[%s0 + $0xa0] sm:$0xff]
    %v54 = vld [vmem:[%s0 + $0xa8] sm:$0xff]
    %v55 = vld [vmem:[%s0 + $0xb0] sm:$0xff]
    %v56 = vld [vmem:[%s0 + $0xb8] sm:$0xff]
    %v57 = vld [vmem:[%s0 + $0xc0] sm:$0xff]
    %v58 = vld [vmem:[%s1] sm:$0xff]
    %v59 = vld [vmem:[%s1 + $0x8] sm:$0xff]
    %v60 = vld [vmem:[%s1 + $0x10] sm:$0xff]
    %v61 = vld [vmem:[%s1 + $0x18] sm:$0xff]
    %v62 = vld [vmem:[%s2] sm:$0xff]
    %v63 = vld [vmem:[%s2 + $0x8] sm:$0xff]
    %v64 = vld [vmem:[%s2 + $0x10] sm:$0xff]
    %v65 = vld [vmem:[%s2 + $0x18] sm:$0xff]
    %67 = vset.pattern.permute.xlu0 0
    %68 = vperm.xlu0 %67, %v62
    %v69 = vpop.permute.xlu0 %68
    %72 = vset.pattern.permute.xlu0 0
    %73 = vperm.xlu0 %72, %v63
    %v74 = vpop.permute.xlu0 %73
    %77 = vset.pattern.permute.xlu0 0
    %78 = vperm.xlu0 %77, %v64
    %v79 = vpop.permute.xlu0 %78
    %82 = vset.pattern.permute.xlu0 0
    %83 = vperm.xlu0 %82, %v65
    %v84 = vpop.permute.xlu0 %83
    %vm86 = vcmask 64512
    %v88 = vsel %vm86, %v58, 0
    %v91 = vsel %vm86, %v59, 0
    %v94 = vsel %vm86, %v60, 0
    %v97 = vsel %vm86, %v61, 0
    %v100 = vsel %vm86, %v33, 0
    %v103 = vsel %vm86, %v34, 0
    %v106 = vsel %vm86, %v35, 0
    %v109 = vsel %vm86, %v36, 0
    %v112 = vsel %vm86, %v37, 0
    %v115 = vsel %vm86, %v38, 0
    %v118 = vsel %vm86, %v39, 0
    %v121 = vsel %vm86, %v40, 0
    %v124 = vsel %vm86, %v41, 0
    %v127 = vsel %vm86, %v42, 0
    %v130 = vsel %vm86, %v43, 0
    %v133 = vsel %vm86, %v44, 0
    %v136 = vsel %vm86, %v45, 0
    %v139 = vsel %vm86, %v46, 0
    %v142 = vsel %vm86, %v47, 0
    %v145 = vsel %vm86, %v48, 0
    %v148 = vsel %vm86, %v49, 0
    %v151 = vsel %vm86, %v50, 0
    %v154 = vsel %vm86, %v51, 0
    %v157 = vsel %vm86, %v52, 0
    %v160 = vsel %vm86, %v53, 0
    %v163 = vsel %vm86, %v54, 0
    %v166 = vsel %vm86, %v55, 0
    %v169 = vsel %vm86, %v56, 0
    %v172 = vsel %vm86, %v57, 0
    %174 = vmatpush.xpose.msra.mxu0 %v145
    %175 = vmatpush.xpose.msra.mxu0 %v142
    %176 = vmatpush.xpose.msra.mxu0 %v139
    %177 = vmatpush.xpose.msra.mxu0 %v136
    %178 = vmatpush.xpose.msra.mxu0 %v133
    %179 = vmatpush.xpose.msra.mxu0 %v130
    %180 = vmatpush.xpose.msra.mxu0 %v127
    %181 = vmatpush.xpose.msra.mxu0 %v124
    %182 = vmatpush.xpose.msra.mxu0 %v121
    %183 = vmatpush.xpose.msra.mxu0 %v118
    %184 = vmatpush.xpose.msra.mxu0 %v115
    %185 = vmatpush.xpose.msra.mxu0 %v112
    %186 = vmatpush.xpose.msra.mxu0 %v109
    %187 = vmatpush.xpose.msra.mxu0 %v106
    %188 = vmatpush.xpose.msra.mxu0 %v103
    %189 = vmatpush.xpose.msra.mxu0 %v100
    %190 = vmatmul.f32.gmra.mxu0 %v88
    %v191 = vpop.f32.mrf.mxu0
    %v192 = vadd.f32 %v69, %v191
    %193 = vmatmul.f32.gmra.mxu0 %v91
    %v194 = vpop.f32.mrf.mxu0
    %v195 = vadd.f32 %v74, %v194
    %196 = vmatmul.f32.gmra.mxu0 %v94
    %v197 = vpop.f32.mrf.mxu0
    %v198 = vadd.f32 %v79, %v197
    %199 = vmatmul.f32.gmra.mxu0 %v97
    %v200 = vpop.f32.mrf.mxu0
    %v201 = vadd.f32 %v84, %v200
    %202 = vdwg.mxu0
    %203 = vmatpush.xpose.msra.mxu0 0.0
    %204 = vmatpush.xpose.msra.mxu0 0.0
    %205 = vmatpush.xpose.msra.mxu0 0.0
    %206 = vmatpush.xpose.msra.mxu0 0.0
    %207 = vmatpush.xpose.msra.mxu0 0.0
    %208 = vmatpush.xpose.msra.mxu0 0.0
    %209 = vmatpush.xpose.msra.mxu0 0.0
    %210 = vmatpush.xpose.msra.mxu0 %v172
    %211 = vmatpush.xpose.msra.mxu0 %v169
    %212 = vmatpush.xpose.msra.mxu0 %v166
    %213 = vmatpush.xpose.msra.mxu0 %v163
    %214 = vmatpush.xpose.msra.mxu0 %v160
    %215 = vmatpush.xpose.msra.mxu0 %v157
    %216 = vmatpush.xpose.msra.mxu0 %v154
    %217 = vmatpush.xpose.msra.mxu0 %v151
    %218 = vmatpush.xpose.msra.mxu0 %v148
    %219 = vmatmul.f32.gmra.mxu0 %v88
    %v220 = vpop.f32.mrf.mxu0
    %v221 = vadd.f32 %v69, %v220
    %222 = vmatmul.f32.gmra.mxu0 %v91
    %v223 = vpop.f32.mrf.mxu0
    %v224 = vadd.f32 %v74, %v223
    %225 = vmatmul.f32.gmra.mxu0 %v94
    %v226 = vpop.f32.mrf.mxu0
    %v227 = vadd.f32 %v79, %v226
    %228 = vmatmul.f32.gmra.mxu0 %v97
    %v229 = vpop.f32.mrf.mxu0
    %v230 = vadd.f32 %v84, %v229
    %231 = vdwg.mxu0
    %v232 = vmax.f32 %v192, 0.0
    %v233 = vmax.f32 %v221, 0.0
    %v234 = vmax.f32 %v195, 0.0
    %v235 = vmax.f32 %v224, 0.0
    %v236 = vmax.f32 %v198, 0.0
    %v237 = vmax.f32 %v227, 0.0
    %v238 = vmax.f32 %v201, 0.0
    %v239 = vmax.f32 %v230, 0.0
    %v240 = vld [vmem:[%s3] sm:$0xff]
    %v241 = vld [vmem:[%s3 + $0x8] sm:$0xff]
    %v242 = vld [vmem:[%s4] sm:$0xff]
    %v243 = vld [vmem:[%s4 + $0x8] sm:$0xff]
    %245 = vset.pattern.permute.xlu0 0
    %246 = vperm.xlu0 %245, %v242
    %v247 = vpop.permute.xlu0 %246
    %250 = vset.pattern.permute.xlu0 0
    %251 = vperm.xlu0 %250, %v243
    %v252 = vpop.permute.xlu0 %251
    %vm254 = vcmask 261120
    %v256 = vsel %vm254, %v240, 0
    %v259 = vsel %vm254, %v241, 0
    %261 = vmatpush.msra.mxu0 0.0
    %262 = vmatpush.msra.mxu0 0.0
    %263 = vmatpush.msra.mxu0 0.0
    %264 = vmatpush.msra.mxu0 0.0
    %265 = vmatpush.msra.mxu0 0.0
    %266 = vmatpush.msra.mxu0 0.0
    %267 = vmatpush.msra.mxu0 0.0
    %268 = vmatpush.msra.mxu0 0.0
    %269 = vmatpush.msra.mxu0 0.0
    %270 = vmatpush.msra.mxu0 0.0
    %271 = vmatpush.msra.mxu0 0.0
    %272 = vmatpush.msra.mxu0 0.0
    %273 = vmatpush.msra.mxu0 %v238
    %274 = vmatpush.msra.mxu0 %v236
    %275 = vmatpush.msra.mxu0 %v234
    %276 = vmatpush.msra.mxu0 %v232
    %277 = vmatmul.f32.gmra.mxu0 %v256
    %v278 = vpop.f32.mrf.mxu0
    %v279 = vadd.f32 %v247, %v278
    %280 = vmatmul.f32.gmra.mxu0 %v259
    %v281 = vpop.f32.mrf.mxu0
    %v282 = vadd.f32 %v252, %v281
    %283 = vdwg.mxu0
    %284 = vmatpush.msra.mxu0 0.0
    %285 = vmatpush.msra.mxu0 0.0
    %286 = vmatpush.msra.mxu0 0.0
    %287 = vmatpush.msra.mxu0 0.0
    %288 = vmatpush.msra.mxu0 0.0
    %289 = vmatpush.msra.mxu0 0.0
    %290 = vmatpush.msra.mxu0 0.0
    %291 = vmatpush.msra.mxu0 0.0
    %292 = vmatpush.msra.mxu0 0.0
    %293 = vmatpush.msra.mxu0 0.0
    %294 = vmatpush.msra.mxu0 0.0
    %295 = vmatpush.msra.mxu0 0.0
    %296 = vmatpush.msra.mxu0 %v239
    %297 = vmatpush.msra.mxu0 %v237
    %298 = vmatpush.msra.mxu0 %v235
    %299 = vmatpush.msra.mxu0 %v233
    %300 = vmatmul.f32.gmra.mxu0 %v256
    %v301 = vpop.f32.mrf.mxu0
    %v302 = vadd.f32 %v247, %v301
    %303 = vmatmul.f32.gmra.mxu0 %v259
    %v304 = vpop.f32.mrf.mxu0
    %v305 = vadd.f32 %v252, %v304
    %306 = vdwg.mxu0
    %v307 = vmax.f32 %v279, 0.0
    %v308 = vmax.f32 %v302, 0.0
    %v309 = vmax.f32 %v282, 0.0
    %v310 = vmax.f32 %v305, 0.0
    %v311 = vld [vmem:[%s5] sm:$0xff]
    %v312 = vld [vmem:[%s6] sm:$0xff]
    %314 = vset.pattern.permute.xlu0 0
    %315 = vperm.xlu0 %314, %v312
    %v316 = vpop.permute.xlu0 %315
    %vm318 = vcmask 130048
    %v320 = vsel %vm318, %v311, 0
    %322 = vmatpush.msra.mxu0 0.0
    %323 = vmatpush.msra.mxu0 0.0
    %324 = vmatpush.msra.mxu0 0.0
    %325 = vmatpush.msra.mxu0 0.0
    %326 = vmatpush.msra.mxu0 0.0
    %327 = vmatpush.msra.mxu0 0.0
    %328 = vmatpush.msra.mxu0 0.0
    %329 = vmatpush.msra.mxu0 0.0
    %330 = vmatpush.msra.mxu0 0.0
    %331 = vmatpush.msra.mxu0 0.0
    %332 = vmatpush.msra.mxu0 0.0
    %333 = vmatpush.msra.mxu0 0.0
    %334 = vmatpush.msra.mxu0 0.0
    %335 = vmatpush.msra.mxu0 0.0
    %336 = vmatpush.msra.mxu0 %v309
    %337 = vmatpush.msra.mxu0 %v307
    %338 = vmatmul.f32.gmra.mxu0 %v320
    %v339 = vpop.f32.mrf.mxu0
    %v340 = vadd.f32 %v316, %v339
    %341 = vdwg.mxu0
    %342 = vmatpush.msra.mxu0 0.0
    %343 = vmatpush.msra.mxu0 0.0
    %344 = vmatpush.msra.mxu0 0.0
    %345 = vmatpush.msra.mxu0 0.0
    %346 = vmatpush.msra.mxu0 0.0
    %347 = vmatpush.msra.mxu0 0.0
    %348 = vmatpush.msra.mxu0 0.0
    %349 = vmatpush.msra.mxu0 0.0
    %350 = vmatpush.msra.mxu0 0.0
    %351 = vmatpush.msra.mxu0 0.0
    %352 = vmatpush.msra.mxu0 0.0
    %353 = vmatpush.msra.mxu0 0.0
    %354 = vmatpush.msra.mxu0 0.0
    %355 = vmatpush.msra.mxu0 0.0
    %356 = vmatpush.msra.mxu0 %v310
    %357 = vmatpush.msra.mxu0 %v308
    %358 = vmatmul.f32.gmra.mxu0 %v320
    %v359 = vpop.f32.mrf.mxu0
    %v360 = vadd.f32 %v316, %v359
    %361 = vdwg.mxu0
    %v362 = vmax.f32 %v340, 0.0
    %v363 = vmax.f32 %v360, 0.0
    %v364 = vld [vmem:[%s7] sm:$0xff]
    %366 = vset.pattern.permute.xlu0 0
    %367 = vperm.xlu0 %366, %v364
    %v368 = vpop.permute.xlu0 %367
    %v370 = vmul.f32 %v368, %v362
    %v371 = vmul.f32 %v368, %v363
    %v372 = vrot.slane %v370, 4
    %v373 = vadd.f32 %v370, %v372
    %v374 = vrot.slane %v373, 2
    %v375 = vadd.f32 %v373, %v374
    %v376 = vrot.slane %v375, 1
    %v377 = vadd.f32 %v375, %v376
    %vm378 = vcmask 588800
    %v379 = vsel %vm378, %v371, 0.0
    %v380 = vrot.slane %v379, 4
    %v381 = vadd.f32 %v379, %v380
    %v382 = vrot.slane %v381, 2
    %v383 = vadd.f32 %v381, %v382
    %v384 = vrot.slane %v383, 1
    %v385 = vadd.f32 %v383, %v384
    %s386 = scalar_lea.vmem %s7, 8
    %v387 = vld [vmem:[%s386] sm:$0xff]
    %389 = vset.pattern.permute.xlu0 0
    %390 = vperm.xlu0 %389, %v387
    %v391 = vpop.permute.xlu0 %390
    %v393 = vmul.f32 %v391, %v362
    %v394 = vmul.f32 %v391, %v363
    %v395 = vrot.slane %v393, 4
    %v396 = vadd.f32 %v393, %v395
    %v397 = vrot.slane %v396, 2
    %v398 = vadd.f32 %v396, %v397
    %v399 = vrot.slane %v398, 1
    %v400 = vadd.f32 %v398, %v399
    %v401 = vsel %vm378, %v394, 0.0
    %v402 = vrot.slane %v401, 4
    %v403 = vadd.f32 %v401, %v402
    %v404 = vrot.slane %v403, 2
    %v405 = vadd.f32 %v403, %v404
    %v406 = vrot.slane %v405, 1
    %v407 = vadd.f32 %v405, %v406
    %vm408 = vcmask 1040384
    %v409 = vsel %vm408, %v377, %v400
    %v410 = vsel %vm408, %v385, %v407
    %v411 = vld [vmem:[%s8] sm:$0x3]
    %413 = vset.pattern.permute.xlu0 0
    %414 = vperm.xlu0 %413, %v411
    %v415 = vpop.permute.xlu0 %414
    %v417 = vadd.f32 %v409, %v415
    %v418 = vadd.f32 %v410, %v415
    %v421 = vrot.slane %v418, 6
    %vm422 = vcmask 1041408
    %v423 = vsel %vm422, %v417, %v421
    %vm425 = vcmask 584706
    %vm426 = vmor %vm425, %vm422
    %427 = vst.msk [vmem:[#allocation2] sm:$0xf] %vm426, %v423
    // Predicated region
    $region38: #{tpu_custom_call.1} parent=1 // pred_check
      _
    $region39: #{tpu_custom_call.1} parent=1 // pred_check_branch
      %429 = sbr.rel (0) target = $region41
    $region40: #{tpu_custom_call.1} parent=1 // pred_region
      %431 = vsyncadd [#allocation3], 0
      %s433 = sshll.u32 [#allocation2], 4
      %s434 = int_to_ptr.vmem [resolvable:$true] %s433
      %s435 = sshll.u32 %s9, 4
      %s436 = int_to_ptr.hbm [resolvable:$true] %s435
      %438 = dma.vmem_to_hbm [thread:$0]  %s434, 64, %s436, [#allocation3]
    $region41: #{tpu_custom_call.1} parent=1 // pred_fallthru
      _
    // Predicated region
    $region42: #{tpu_custom_call.1} parent=1 // pred_check
      _
    $region43: #{tpu_custom_call.1} parent=1 // pred_check_branch
      %440 = sbr.rel (0) target = $region45
    $region44: #{tpu_custom_call.1} parent=1 // pred_region
      %442 = dma.done [#allocation3], 64
    $region45: #{tpu_custom_call.1} parent=1 // pred_fallthru
      _
    %443 = vsyncpa [#allocation3], 1

</llo_original>
